<compile_context>
chip_gen: v7x
topology: tpu7x:2x2x1
jax: 0.10.0
libtpu: 0.0.40
codegen_flags: <defaults>
</compile_context>

<pallas_src>
import jax
import jax.numpy as jnp
from jax.experimental import pallas as pl
from jax.experimental.pallas import tpu as pltpu

_IGNORE_INDEX = -100  # PyTorch default for cross_entropy / nll_loss


def _cross_entropy_kernel(logits_ref, y_ref, out_ref):
    """out[i,0] = logsumexp(logits[i]) - logits[i, y[i]] (0 where y == ignore_index)."""
    x = logits_ref[...]                                   # native dtype (f32 or bf16)
    y = y_ref[...]                                        # (TILE_N, 1) int32
    # Row max and target gather on the raw tile: both exact, and on bf16 inputs
    # they pack 2/vreg instead of forcing extra f32-width VPU passes.
    m = jnp.max(x, axis=-1, keepdims=True).astype(jnp.float32)       # (TILE_N, 1)
    col = jax.lax.broadcasted_iota(jnp.int32, x.shape, 1)
    tgt = jnp.sum(jnp.where(col == y, x, jnp.zeros_like(x)),          # <=1 nonzero/row
                  axis=-1, keepdims=True).astype(jnp.float32)         # exact sum
    shifted = x.astype(jnp.float32) - m                                # f32 path
    sumexp = jnp.sum(jnp.exp(shifted), axis=-1, keepdims=True)
    loss = jnp.log(sumexp) + m - tgt                                   # lse - x[i, y[i]]
    out_ref[...] = jnp.where(y == _IGNORE_INDEX, 0.0, loss)


def _nll_kernel(logp_ref, y_ref, out_ref):
    """out[i,0] = -logp[i, y[i]] (0 where y == ignore_index)."""
    logp = logp_ref[...]
    y = y_ref[...]
    col = jax.lax.broadcasted_iota(jnp.int32, logp.shape, 1)
    tgt = jnp.sum(jnp.where(col == y, logp, jnp.zeros_like(logp)),
                  axis=-1, keepdims=True).astype(jnp.float32)
    out_ref[...] = jnp.where(y == _IGNORE_INDEX, 0.0, -tgt)


def _vmem_budgets():
    """(work_budget_bytes, vmem_limit_bytes), generation-aware.

    v5e/v6e: 128 MiB physical VMEM -> ~72 MiB working set, 96 MiB scoped limit.
    v7x:      64 MiB per TensorCore -> ~36 MiB working set, 48 MiB scoped limit.
    Unknown / older parts fall back from the queried capacity (or a conservative
    64 MiB default if the query fails).
    """
    phys = None
    try:
        phys = getattr(pltpu.get_tpu_info(), "vmem_capacity_bytes", None)
    except Exception:
        phys = None
    if not phys:
        phys = 64 * 1024 * 1024
    limit = min(int(phys * 3 // 4), 96 * 1024 * 1024)
    work = int(limit * 3 // 4)
    return work, limit


def _choose_tile_n(n, c, itemsize, work_budget):
    """Pick a row-tile so double-buffered input + f32 intermediates fit VMEM."""
    # Per row: 2 buffers of the native-dtype block + ~3 full-width f32
    # intermediates (upcast / shifted / exp) + y/out slivers.
    bytes_per_row = c * (2 * itemsize + 12) + 16
    max_rows = max(work_budget // bytes_per_row, 8)
    n_rounded = pl.cdiv(max(n, 1), 8) * 8
    cap = min(max_rows, n_rounded)
    tile = 8
    for cand in (8192, 4096, 2048, 1024, 512, 256, 128, 64, 32, 16, 8):
        if cand <= cap:
            tile = cand
            break
    # v7x megacore: give the "parallel" row axis at least 2 grid steps when the
    # problem is big enough to be worth splitting (no-op on single-TC v5e/v6e).
    while tile >= 256 and pl.cdiv(n, tile) < 2:
        tile //= 2
    # TODO(synk): for vocab-scale C (e.g. >32k) add a second "arbitrary" grid axis
    # over C with an online-logsumexp accumulator so a (TILE_N, TILE_C) block fits VMEM.
    return tile


def onem_etay_forward(state_output, y, on_simplex=False):
    """Pallas equivalent of OnemEtay.forward for 2-D (N, C) inputs.

    on_simplex=False: F.cross_entropy(state_output, y, reduction='none')
    on_simplex=True : F.nll_loss(state_output, y, reduction='none')
    Returns per-sample loss of shape (N,), in state_output.dtype.
    """
    n, c = state_output.shape
    itemsize = jnp.dtype(state_output.dtype).itemsize
    work_budget, vmem_limit = _vmem_budgets()
    tile_n = _choose_tile_n(n, c, itemsize, work_budget)
    num_tiles = pl.cdiv(n, tile_n)

    y2d = y.astype(jnp.int32).reshape(n, 1)
    kernel = _nll_kernel if on_simplex else _cross_entropy_kernel

    cost = pl.CostEstimate(
        flops=(2 if on_simplex else 5) * n * c,
        transcendentals=0 if on_simplex else n * c,
        bytes_accessed=n * c * itemsize + 8 * n,
    )

    out = pl.pallas_call(
        kernel,
        out_shape=jax.ShapeDtypeStruct((n, 1), jnp.float32),
        grid_spec=pl.GridSpec(
            grid=(num_tiles,),                      # no pad: last block is partial/masked
            in_specs=[
                pl.BlockSpec((tile_n, c), lambda i: (i, 0)),
                pl.BlockSpec((tile_n, 1), lambda i: (i, 0)),
            ],
            out_specs=pl.BlockSpec((tile_n, 1), lambda i: (i, 0)),
        ),
        compiler_params=pltpu.CompilerParams(
            dimension_semantics=("parallel",),      # rows independent -> v7x megacore
            vmem_limit_bytes=vmem_limit,
        ),
        cost_estimate=cost,
    )(state_output, y2d)
    return out[:, 0].astype(state_output.dtype)


if __name__ == "__main__":
    key = jax.random.PRNGKey(0)
    k_logits, k_y, k2 = jax.random.split(key, 3)

    # Small shapes matching the module's forward: (N, C) logits / log-probs + int labels.
    N, C = 8, 32
    logits = jax.random.normal(k_logits, (N, C), dtype=jnp.float32)
    y = jax.random.randint(k_y, (N,), 0, C, dtype=jnp.int32)
    y = y.at[3].set(_IGNORE_INDEX)  # exercise PyTorch's default ignore_index=-100

    # on_simplex=False -> cross_entropy(logits, y, reduction='none')
    loss_ce = onem_etay_forward(logits, y, on_simplex=False)
    jax.block_until_ready(loss_ce)
    ref_ce = jax.nn.logsumexp(logits, axis=-1) - logits[jnp.arange(N), jnp.clip(y, 0, C - 1)]
    ref_ce = jnp.where(y == _IGNORE_INDEX, 0.0, ref_ce)
    assert jnp.allclose(loss_ce, ref_ce, atol=1e-5, rtol=1e-5)

    # on_simplex=True -> nll_loss(log_probs, y, reduction='none')
    log_probs = jax.nn.log_softmax(logits, axis=-1)
    loss_nll = onem_etay_forward(log_probs, y, on_simplex=True)
    jax.block_until_ready(loss_nll)
    ref_nll = jnp.where(y == _IGNORE_INDEX, 0.0,
                        -log_probs[jnp.arange(N), jnp.clip(y, 0, C - 1)])
    assert jnp.allclose(loss_nll, ref_nll, atol=1e-5, rtol=1e-5)

    # Multi-tile + un-padded partial last block + bf16 input path
    # (N not a multiple of the tile, grid > 1, masked boundary block).
    N2, C2 = 1100, 96
    logits2 = jax.random.normal(k2, (N2, C2), dtype=jnp.bfloat16)
    y2 = jax.random.randint(jax.random.PRNGKey(7), (N2,), 0, C2, dtype=jnp.int32)
    loss2 = onem_etay_forward(logits2, y2, on_simplex=False)
    jax.block_until_ready(loss2)
    l2f = logits2.astype(jnp.float32)
    ref2 = jax.nn.logsumexp(l2f, axis=-1) - l2f[jnp.arange(N2), y2]
    assert jnp.allclose(loss2.astype(jnp.float32), ref2, atol=5e-2, rtol=5e-2)

    print("KERNEL_OK")
</pallas_src>

<mosaic_0001>
module attributes {stable_mosaic.version = 11 : i64} {
  func.func @_cross_entropy_kernel(%arg0: i32, %arg1: memref<8x32xf32, #tpu.memory_space<vmem>>, %arg2: memref<8x1xi32, #tpu.memory_space<vmem>>, %arg3: memref<8x1xf32, #tpu.memory_space<vmem>>) attributes {dimension_semantics = [#tpu.dimension_semantics<parallel>], iteration_bounds = array<i64: 1>, scalar_prefetch = 0 : i64, scratch_operands = 0 : i64, tpu.core_type = #tpu.core_type<tc>, window_params = [{transform_indices = @transform_0, window_bounds = array<i64: 8, 32>}, {transform_indices = @transform_1, window_bounds = array<i64: 8, 1>}, {transform_indices = @transform_2, window_bounds = array<i64: 8, 1>}]} {
    %c0 = arith.constant 0 : index
    %c0_0 = arith.constant 0 : index
    %0 = vector.load %arg1[%c0, %c0_0] : memref<8x32xf32, #tpu.memory_space<vmem>>, vector<8x32xf32>
    %c0_1 = arith.constant 0 : index
    %c0_2 = arith.constant 0 : index
    %1 = vector.load %arg2[%c0_1, %c0_2] : memref<8x1xi32, #tpu.memory_space<vmem>>, vector<8x1xi32>
    %cst = arith.constant dense<0xFF800000> : vector<8xf32>
    %2 = vector.multi_reduction <maximumf>, %0, %cst [1] : vector<8x32xf32> to vector<8xf32>
    %3 = vector.shape_cast %2 : vector<8xf32> to vector<8x1xf32>
    %4 = tpu.iota {dimensions = array<i32: 1>} : vector<8x32xi32>
    %5 = vector.broadcast %1 : vector<8x1xi32> to vector<8x32xi32>
    %6 = arith.cmpi eq, %4, %5 : vector<8x32xi32>
    %cst_3 = arith.constant 0.000000e+00 : f32
    %7 = vector.broadcast %cst_3 : f32 to vector<8x32xf32>
    %8 = arith.select %6, %0, %7 : vector<8x32xi1>, vector<8x32xf32>
    %cst_4 = arith.constant dense<0.000000e+00> : vector<8xf32>
    %9 = vector.multi_reduction <add>, %8, %cst_4 [1] : vector<8x32xf32> to vector<8xf32>
    %10 = vector.shape_cast %9 : vector<8xf32> to vector<8x1xf32>
    %11 = vector.broadcast %3 : vector<8x1xf32> to vector<8x32xf32>
    %12 = arith.subf %0, %11 : vector<8x32xf32>
    %13 = math.exp %12 : vector<8x32xf32>
    %cst_5 = arith.constant dense<0.000000e+00> : vector<8xf32>
    %14 = vector.multi_reduction <add>, %13, %cst_5 [1] : vector<8x32xf32> to vector<8xf32>
    %15 = vector.shape_cast %14 : vector<8xf32> to vector<8x1xf32>
    %16 = math.log %15 : vector<8x1xf32>
    %17 = arith.addf %16, %3 : vector<8x1xf32>
    %18 = arith.subf %17, %10 : vector<8x1xf32>
    %c-100_i32 = arith.constant -100 : i32
    %19 = vector.broadcast %c-100_i32 : i32 to vector<8x1xi32>
    %20 = arith.cmpi eq, %1, %19 : vector<8x1xi32>
    %cst_6 = arith.constant 0.000000e+00 : f32
    %21 = vector.broadcast %cst_6 : f32 to vector<8x1xf32>
    %22 = arith.select %20, %21, %18 : vector<8x1xi1>, vector<8x1xf32>
    %c0_7 = arith.constant 0 : index
    %c0_8 = arith.constant 0 : index
    %23 = vector.load %arg3[%c0_7, %c0_8] : memref<8x1xf32, #tpu.memory_space<vmem>>, vector<8x1xf32>
    tpu.vector_store %arg3[%c0_7, %c0_8], %22 {strides = array<i32>} : memref<8x1xf32, #tpu.memory_space<vmem>>, vector<8x1xf32>,
    return
  }
  func.func @transform_0(%arg0: i32) -> (i32, i32) {
    %c0_i32 = arith.constant 0 : i32
    %c0_i32_0 = arith.constant 0 : i32
    return %arg0, %c0_i32 : i32, i32
  }
  func.func @transform_1(%arg0: i32) -> (i32, i32) {
    %c0_i32 = arith.constant 0 : i32
    %c0_i32_0 = arith.constant 0 : i32
    return %arg0, %c0_i32 : i32, i32
  }
  func.func @transform_2(%arg0: i32) -> (i32, i32) {
    %c0_i32 = arith.constant 0 : i32
    %c0_i32_0 = arith.constant 0 : i32
    return %arg0, %c0_i32 : i32, i32
  }
}

</mosaic_0001>

<llo_original>
// kernel: tpu_custom_call.1
$region0: #{tpu_custom_call.1}
  #allocation0 [shape = 'u32[]', space=smem, size = 0x4, offset = 0x4, fixed_abs, tag = 'smem constant byte address 0x4 - core index']
  #allocation1 [shape = 'u32[144,128]{1,0:T(1,128)}', space=vmem, size = 0x12000, scoped, tag = 'internal scratch']
  %s0 = inlined_call_operand.vmem [shape: f32[8,32], index: 0, kind: input, shape index: {}]
  %s1 = inlined_call_operand.vmem [shape: s32[8,1], index: 1, kind: input, shape index: {}]
  %s2 = inlined_call_operand.vmem [shape: f32[8,1], index: 2, kind: output, shape index: {}]
  %s3 = sld [smem:[#allocation0]]
  $region18: #{tpu_custom_call.1} parent=0
    _
  %s5 = ssub.s32 1, %s3
  %s6 = scalar_select 0, %s5, %s3
  // Predicated region
  $region2: #{tpu_custom_call.1} parent=0 // pred_check
    _
  $region3: #{tpu_custom_call.1} parent=0 // pred_check_branch
    %8 = sbr.rel (0) target = $region5
  $region4: #{tpu_custom_call.1} parent=0 // pred_region
    _
  $region5: #{tpu_custom_call.1} parent=0 // pred_fallthru
    _
  // Predicated region
  $region6: #{tpu_custom_call.1} parent=0 // pred_check
    _
  $region7: #{tpu_custom_call.1} parent=0 // pred_check_branch
    %10 = sbr.rel (0) target = $region9
  $region8: #{tpu_custom_call.1} parent=0 // pred_region
    _
  $region9: #{tpu_custom_call.1} parent=0 // pred_fallthru
    _
  %v11 = vld [vmem:[%s0] sm:$0xff]
  %v12 = vld [vmem:[%s1] sm:$0xff]
  %vm13 = vcmask 261120
  %v14 = vsel %vm13, %v11, -inf
  %15 = vmax.xlane.f32.xlu0 %v14
  %v16 = vpop.xlane.xlu0 %15
  %v17 = vlaneseq
  %v18 = vand.u32 %v17, 127
  %19 = vset.pattern.permute.xlu0 0
  %20 = vperm.xlu0 %19, %v12
  %v21 = vpop.permute.xlu0 %20
  %vm22 = vcmp.eq.s32.totalorder %v18, %v21
  %v23 = vsel %vm22, %v11, 0.0
  %v24 = vsel %vm13, %v23, 0.0
  %25 = vadd.xlane.f32.xlu0 %v24
  %v26 = vpop.xlane.xlu0 %25
  %v27 = vsub.f32 %v11, %v16
  %v28 = vmul.f32 %v27, 1.442695
  %v29 = vpow.pop %v28
  %v30 = vsel %vm13, %v29, 0.0
  %31 = vadd.xlane.f32.xlu0 %v30
  %v32 = vpop.xlane.xlu0 %31
  %v33 = vlog2.pop %v32
  %v34 = vmul.f32 %v33, 0.6931472
  %v35 = vadd.f32 %v34, %v16
  %v36 = vsub.f32 %v35, %v26
  %vm37 = vcmp.eq.s32.totalorder %v12, 4294967196
  %v38 = vsel %vm37, 0.0, %v36
  %vm39 = vcmask 7168
  %40 = vst.msk [vmem:[%s2] sm:$0xff] %vm39, %v38
  // Predicated region
  $region10: #{tpu_custom_call.1} parent=0 // pred_check
    _
  $region11: #{tpu_custom_call.1} parent=0 // pred_check_branch
    %42 = sbr.rel (0) target = $region13
  $region12: #{tpu_custom_call.1} parent=0 // pred_region
    _
  $region13: #{tpu_custom_call.1} parent=0 // pred_fallthru
    _
  // Predicated region
  $region14: #{tpu_custom_call.1} parent=0 // pred_check
    _
  $region15: #{tpu_custom_call.1} parent=0 // pred_check_branch
    %44 = sbr.rel (0) target = $region17
  $region16: #{tpu_custom_call.1} parent=0 // pred_region
    _
  $region17: #{tpu_custom_call.1} parent=0 // pred_fallthru
    _

</llo_original>
